<compile_context>
chip_gen: v5e
topology: v5e:2x2
jax: 0.10.0
libtpu: 0.0.40
codegen_flags: <defaults>
</compile_context>

<pallas_src>
import jax
import jax.numpy as jnp
from jax.experimental import pallas as pl
from jax.experimental.pallas import tpu as pltpu


def gcn_kernel(x_ref, w1_ref, b1_ref, w2_ref, o_ref):
    # x_ref : (S, TBN)   TB batch elements packed along the lane axis
    # w1_ref: (TBN, TBN) block-diagonal replication of (W1^T + I)  [residual fused]
    # b1_ref: (1, TBN)   conv1 bias tiled TB times
    # w2_ref: (S, S)     conv2 weight
    # o_ref : (S, TBN)
    x = x_ref[...].astype(jnp.float32)
    # conv1 + residual: one dense, lane-wide MXU matmul against block-diag(W1^T + I).
    h = jnp.dot(x, w1_ref[...], preferred_element_type=jnp.float32)
    # bias + ReLU on the VPU (residual already folded into the weight).
    h = jnp.maximum(h + b1_ref[...], 0.0)
    # conv2: mixes the state axis; (S,S) @ (S,TBN) -> lane-dense output.
    out = jnp.dot(w2_ref[...], h, preferred_element_type=jnp.float32)
    o_ref[...] = out.astype(o_ref.dtype)


def _choose_batch_block(B, N, max_lanes=512):
    """Pick TB = batch elements per grid step.

    Constraints: TB divides B, and the block lane width TB*N is either a
    multiple of 128 (lane-dense) or the full B*N extent (always legal).
    Prefer choices that leave a grid of >= 2 steps (v7x megacore), then the
    largest TB (amortizes the ~0.35us per-step overhead).  max_lanes caps the
    block-diagonal W1 replica at (512,512) f32 = 1 MiB.
    """
    candidates = []
    for d in range(1, B + 1):
        if B % d:
            continue
        lanes = d * N
        full = (d == B)
        if not full and (lanes % 128 != 0 or lanes > max_lanes):
            continue
        candidates.append(d)
    preferred = [d for d in candidates if B // d >= 2]
    pool = preferred if preferred else candidates
    return max(pool)


def gcn_forward(x, w1, b1, w2, *, max_lanes=512):
    """x: (B, S, N); w1: (N, N) conv1 weight; b1: (N,) conv1 bias; w2: (S, S)."""
    B, S, N = x.shape
    TB = _choose_batch_block(B, N, max_lanes)
    G = B // TB
    TBN = TB * N

    # Wrapper-side layout plumbing (outside the kernel, runs once per call):
    #  * x -> (S, B*N): batch*node packed on the lane axis (lane-dense blocks).
    #  * (W1^T + I) replicated block-diagonally: conv1 AND the residual add become
    #    one dense matmul; no transpose or per-batch loop inside the kernel.
    xt = jnp.transpose(x, (1, 0, 2)).reshape(S, B * N)
    w1t_res = jnp.transpose(w1) + jnp.eye(N, dtype=w1.dtype)             # W1^T + I
    w1_big = jnp.kron(jnp.eye(TB, dtype=w1.dtype), w1t_res)              # (TBN, TBN)
    b1_big = jnp.tile(b1.reshape(1, N), (1, TB))                         # (1, TBN)

    out_t = pl.pallas_call(
        gcn_kernel,
        out_shape=jax.ShapeDtypeStruct((S, B * N), x.dtype),
        grid_spec=pltpu.PrefetchScalarGridSpec(
            num_scalar_prefetch=0,
            grid=(G,),
            in_specs=[
                pl.BlockSpec((S, TBN), lambda g: (0, g)),     # x slab (TB batches)
                pl.BlockSpec((TBN, TBN), lambda g: (0, 0)),   # block-diag (W1^T + I)
                pl.BlockSpec((1, TBN), lambda g: (0, 0)),     # tiled conv1 bias
                pl.BlockSpec((S, S), lambda g: (0, 0)),       # W2 (constant)
            ],
            out_specs=pl.BlockSpec((S, TBN), lambda g: (0, g)),
        ),
        compiler_params=pltpu.CompilerParams(
            dimension_semantics=("parallel",),
            vmem_limit_bytes=32 * 1024 * 1024,  # blocks are tiny; safe on v5e/v6e/v7x
        ),
    )(xt, w1_big, b1_big, w2)

    return jnp.transpose(out_t.reshape(S, B, N), (1, 0, 2))


def gcn_reference(x, w1, b1, w2):
    # Pure-JAX reference matching the PyTorch forward.
    h = jnp.einsum("bsn,mn->bsm", x, w1) + b1[None, None, :]
    h = jnp.maximum(h + x, 0.0)
    return jnp.einsum("st,btn->bsn", w2, h)


if __name__ == "__main__":
    key = jax.random.PRNGKey(0)
    kx, k1, kb, k2 = jax.random.split(key, 4)

    # (B, num_state S, num_node N):
    #   (16,32,16): lane-dense multi-step grid path (TB=8 -> 128-lane blocks, grid=2)
    #   (2, 32,16): full-batch fallback with B*N < 128
    #   (12,32,16): full-batch fallback with lanes not a multiple of 128 (full extent)
    configs = [(16, 32, 16), (2, 32, 16), (12, 32, 16)]
    for (B, S, N) in configs:
        x = jax.random.normal(kx, (B, S, N), dtype=jnp.float32)
        # Conv1d kernel_size=1 -> plain matrices.
        w1 = jax.random.normal(k1, (N, N), dtype=jnp.float32) * 0.1   # conv1 weight
        b1 = jax.random.normal(kb, (N,), dtype=jnp.float32) * 0.1     # conv1 bias
        w2 = jax.random.normal(k2, (S, S), dtype=jnp.float32) * 0.1   # conv2 weight (bias=False)

        out = jax.block_until_ready(gcn_forward(x, w1, b1, w2))
        ref = gcn_reference(x, w1, b1, w2)
        assert out.shape == (B, S, N)
        assert jnp.allclose(out, ref, atol=1e-4, rtol=1e-4), f"mismatch vs reference at {(B, S, N)}"

    print("KERNEL_OK")
</pallas_src>

<mosaic_0001>
module attributes {stable_mosaic.version = 11 : i64} {
  func.func @gcn_kernel(%arg0: i32, %arg1: memref<32x128xf32, #tpu.memory_space<vmem>>, %arg2: memref<128x128xf32, #tpu.memory_space<vmem>>, %arg3: memref<1x128xf32, #tpu.memory_space<vmem>>, %arg4: memref<32x32xf32, #tpu.memory_space<vmem>>, %arg5: memref<32x128xf32, #tpu.memory_space<vmem>>) attributes {dimension_semantics = [#tpu.dimension_semantics<parallel>], iteration_bounds = array<i64: 2>, scalar_prefetch = 0 : i64, scratch_operands = 0 : i64, tpu.core_type = #tpu.core_type<tc>, window_params = [{transform_indices = @transform_0, window_bounds = array<i64: 32, 128>}, {pipeline_mode = #tpu.pipeline_mode<synchronous>, transform_indices = @transform_1, window_bounds = array<i64: 128, 128>}, {pipeline_mode = #tpu.pipeline_mode<synchronous>, transform_indices = @transform_2, window_bounds = array<i64: 1, 128>}, {pipeline_mode = #tpu.pipeline_mode<synchronous>, transform_indices = @transform_3, window_bounds = array<i64: 32, 32>}, {transform_indices = @transform_4, window_bounds = array<i64: 32, 128>}]} {
    %c0 = arith.constant 0 : index
    %c0_0 = arith.constant 0 : index
    %0 = vector.load %arg1[%c0, %c0_0] : memref<32x128xf32, #tpu.memory_space<vmem>>, vector<32x128xf32>
    %c0_1 = arith.constant 0 : index
    %c0_2 = arith.constant 0 : index
    %1 = vector.load %arg2[%c0_1, %c0_2] : memref<128x128xf32, #tpu.memory_space<vmem>>, vector<128x128xf32>
    %cst = arith.constant dense<0.000000e+00> : vector<32x128xf32>
    %2 = tpu.matmul %0, %1, %cst {dimension_numbers = #tpu.dot_dimension_numbers<[1], [0], [0], [1], [0, 0, 1, 1], [], []>} : vector<32x128xf32>, vector<128x128xf32>, vector<32x128xf32> -> vector<32x128xf32>
    %c0_3 = arith.constant 0 : index
    %c0_4 = arith.constant 0 : index
    %3 = vector.load %arg3[%c0_3, %c0_4] : memref<1x128xf32, #tpu.memory_space<vmem>>, vector<1x128xf32>
    %4 = vector.broadcast %3 : vector<1x128xf32> to vector<32x128xf32>
    %5 = arith.addf %2, %4 : vector<32x128xf32>
    %cst_5 = arith.constant 0.000000e+00 : f32
    %6 = vector.broadcast %cst_5 : f32 to vector<32x128xf32>
    %7 = arith.maximumf %5, %6 : vector<32x128xf32>
    %c0_6 = arith.constant 0 : index
    %c0_7 = arith.constant 0 : index
    %8 = vector.load %arg4[%c0_6, %c0_7] : memref<32x32xf32, #tpu.memory_space<vmem>>, vector<32x32xf32>
    %cst_8 = arith.constant dense<0.000000e+00> : vector<32x128xf32>
    %9 = tpu.matmul %8, %7, %cst_8 {dimension_numbers = #tpu.dot_dimension_numbers<[1], [0], [0], [1], [0, 0, 1, 1], [], []>} : vector<32x32xf32>, vector<32x128xf32>, vector<32x128xf32> -> vector<32x128xf32>
    %c0_9 = arith.constant 0 : index
    %c0_10 = arith.constant 0 : index
    %10 = vector.load %arg5[%c0_9, %c0_10] : memref<32x128xf32, #tpu.memory_space<vmem>>, vector<32x128xf32>
    tpu.vector_store %arg5[%c0_9, %c0_10], %9 {strides = array<i32>} : memref<32x128xf32, #tpu.memory_space<vmem>>, vector<32x128xf32>,
    return
  }
  func.func @transform_0(%arg0: i32) -> (i32, i32) {
    %c0_i32 = arith.constant 0 : i32
    %c0_i32_0 = arith.constant 0 : i32
    return %c0_i32, %arg0 : i32, i32
  }
  func.func @transform_1(%arg0: i32) -> (i32, i32) {
    %c0_i32 = arith.constant 0 : i32
    %c0_i32_0 = arith.constant 0 : i32
    %c0_i32_1 = arith.constant 0 : i32
    return %c0_i32, %c0_i32_0 : i32, i32
  }
  func.func @transform_2(%arg0: i32) -> (i32, i32) {
    %c0_i32 = arith.constant 0 : i32
    %c0_i32_0 = arith.constant 0 : i32
    %c0_i32_1 = arith.constant 0 : i32
    return %c0_i32, %c0_i32_0 : i32, i32
  }
  func.func @transform_3(%arg0: i32) -> (i32, i32) {
    %c0_i32 = arith.constant 0 : i32
    %c0_i32_0 = arith.constant 0 : i32
    %c0_i32_1 = arith.constant 0 : i32
    return %c0_i32, %c0_i32_0 : i32, i32
  }
  func.func @transform_4(%arg0: i32) -> (i32, i32) {
    %c0_i32 = arith.constant 0 : i32
    %c0_i32_0 = arith.constant 0 : i32
    return %c0_i32, %arg0 : i32, i32
  }
}

</mosaic_0001>

<llo_original>
// kernel: tpu_custom_call.1
$region0: #{tpu_custom_call.1}
  #allocation0 [shape = 'u32[]', space=smem, size = 0x4, offset = 0x4, fixed_abs, tag = 'smem constant byte address 0x4 - core index']
  #allocation1 [shape = 'u32[72,128]{1,0:T(1,128)}', space=vmem, size = 0x9000, scoped, tag = 'internal scratch']
  %s0 = inlined_call_operand.hbm [shape: f32[32,256], index: 0, kind: input, shape index: {}]
  %s1 = inlined_call_operand.hbm [shape: f32[128,128], index: 1, kind: input, shape index: {}]
  %s2 = inlined_call_operand.vmem [shape: f32[1,128], index: 2, kind: input, shape index: {}]
  %s3 = inlined_call_operand.hbm [shape: f32[32,32], index: 3, kind: input, shape index: {}]
  %s4 = inlined_call_operand.hbm [shape: f32[32,256], index: 4, kind: output, shape index: {}]
  %s5 = sld [smem:[#allocation0]]
  $region61: #{tpu_custom_call.1} parent=0
    _
  %s7 = ssub.s32 1, %s5
  %s8 = scalar_select 0, %s7, %s5
  $region1: #{tpu_custom_call.1} parent=0
    #allocation2 [shape = 'u8[32768]{0}', space=vmem, size = 0x8000, scoped, tag = 'input window, operand 0']
    #allocation3 [shape = 's32[2]{0}', space=sflag, size = 0x8, scoped, tag = 'scoped memory for tpu_custom_call.1']
    #allocation4 [shape = 's32[2]{0}', space=sflag, size = 0x8, scoped, tag = 'scoped memory for tpu_custom_call.1']
    #allocation5 [shape = 'u8[65536]{0}', space=vmem, size = 0x10000, scoped, tag = 'input window, operand 1, single buffered']
    #allocation6 [shape = 's32[1]{0}', space=sflag, size = 0x4, scoped, tag = 'scoped memory for tpu_custom_call.1']
    #allocation7 [shape = 'u8[16384]{0}', space=vmem, size = 0x4000, scoped, tag = 'input window, operand 3, single buffered']
    #allocation8 [shape = 'u8[32768]{0}', space=vmem, size = 0x8000, scoped, tag = 'output window, operand 0']
    %9 = vsyncpa [#allocation3], 0
    %s10 = scalar_lea.sflag [#allocation3], 1
    %11 = vsyncpa %s10, 0
    %12 = vsyncpa [#allocation6], 0
    %13 = vsyncpa [#allocation4], 0
    %s14 = scalar_lea.sflag [#allocation4], 1
    %15 = vsyncpa %s14, 0
    loop: start=0, step=1, limit=4
    $region2: #{tpu_custom_call.1} parent=1 // loop_pre_header
      _
    $region3: #{tpu_custom_call.1} parent=1 // loop_header
      %s17 = sphi 0, %s21
      %p18 = scmp.ge.s32.totalorder %s17, 4
      %s27 = sphi 0, %s29
      %s30 = sphi 0, %s27
      %s31 = sphi 0, %s30
      %s47 = sphi 0, %s31
      %s51 = sphi 0, %s51
      %s53 = sphi 0, %s51
      %s54 = sphi 0, %s53
      %s68 = sphi 0, %s54
      %s72 = sphi 0, %s72
      %s74 = sphi 0, %s72
      %s75 = sphi 0, %s74
      %s89 = sphi 0, %s75
      %s93 = sphi 0, %s93
      %s95 = sphi 0, %s93
      %s96 = sphi 0, %s95
      %s110 = sphi 0, %s96
      %s116 = sphi 0, %s118
      %s119 = sphi 0, %s116
      %s120 = sphi 0, %s119
      %s136 = sphi 0, %s120
    $region4: #{tpu_custom_call.1} parent=1 // loop_header_branch
      %20 = sbr.rel (%p18) target = $region8
    $region5: #{tpu_custom_call.1} parent=1 // loop_body
      %s22 = ssub.s32 %s17, 1
      %s23 = ssub.s32 %s17, 2
      %s24 = sadd.s32 %s17, 1
      %s25 = ssub.s32 %s17, %s24
      %p26 = scmp.eq.s32.totalorder %s25, 0
      %s28 = sadd.s32 %s27, 1
      %s29 = scalar_select %p26, %s27, %s28
      %p32 = pneg %p26
      %p33 = scmp.eq.s32.totalorder %s17, 1
      %p34 = por %p32, %p33
      %p35 = scmp.ne.s32.totalorder %s27, %s30
      %p36 = scmp.eq.s32.totalorder %s17, 0
      %p37 = por %p35, %p36
      %p38 = scmp.ne.s32.totalorder %s27, %s30
      %p39 = scmp.eq.s32.totalorder %s22, 1
      %p40 = por %p38, %p39
      %p41 = scmp.ne.s32.totalorder %s30, %s31
      %p42 = scmp.eq.s32.totalorder %s22, 0
      %p43 = por %p41, %p42
      %p44 = scmp.ne.s32.totalorder %s30, %s31
      %p45 = scmp.eq.s32.totalorder %s23, 1
      %p46 = por %p44, %p45
      %p48 = scmp.ne.s32.totalorder %s31, %s47
      %p49 = scmp.eq.s32.totalorder %s23, 0
      %p50 = por %p48, %p49
      %s52 = sadd.s32 %s51, 1
      %p55 = scmp.eq.s32.totalorder %s17, 1
      %p56 = scmp.ne.s32.totalorder %s51, %s53
      %p57 = scmp.eq.s32.totalorder %s17, 0
      %p58 = por %p56, %p57
      %p59 = scmp.ne.s32.totalorder %s51, %s53
      %p60 = scmp.eq.s32.totalorder %s22, 1
      %p61 = por %p59, %p60
      %p62 = scmp.ne.s32.totalorder %s53, %s54
      %p63 = scmp.eq.s32.totalorder %s22, 0
      %p64 = por %p62, %p63
      %p65 = scmp.ne.s32.totalorder %s53, %s54
      %p66 = scmp.eq.s32.totalorder %s23, 1
      %p67 = por %p65, %p66
      %p69 = scmp.ne.s32.totalorder %s54, %s68
      %p70 = scmp.eq.s32.totalorder %s23, 0
      %p71 = por %p69, %p70
      %s73 = sadd.s32 %s72, 1
      %p76 = scmp.eq.s32.totalorder %s17, 1
      %p77 = scmp.ne.s32.totalorder %s72, %s74
      %p78 = scmp.eq.s32.totalorder %s17, 0
      %p79 = por %p77, %p78
      %p80 = scmp.ne.s32.totalorder %s72, %s74
      %p81 = scmp.eq.s32.totalorder %s22, 1
      %p82 = por %p80, %p81
      %p83 = scmp.ne.s32.totalorder %s74, %s75
      %p84 = scmp.eq.s32.totalorder %s22, 0
      %p85 = por %p83, %p84
      %p86 = scmp.ne.s32.totalorder %s74, %s75
      %p87 = scmp.eq.s32.totalorder %s23, 1
      %p88 = por %p86, %p87
      %p90 = scmp.ne.s32.totalorder %s75, %s89
      %p91 = scmp.eq.s32.totalorder %s23, 0
      %p92 = por %p90, %p91
      %s94 = sadd.s32 %s93, 1
      %p97 = scmp.eq.s32.totalorder %s17, 1
      %p98 = scmp.ne.s32.totalorder %s93, %s95
      %p99 = scmp.eq.s32.totalorder %s17, 0
      %p100 = por %p98, %p99
      %p101 = scmp.ne.s32.totalorder %s93, %s95
      %p102 = scmp.eq.s32.totalorder %s22, 1
      %p103 = por %p101, %p102
      %p104 = scmp.ne.s32.totalorder %s95, %s96
      %p105 = scmp.eq.s32.totalorder %s22, 0
      %p106 = por %p104, %p105
      %p107 = scmp.ne.s32.totalorder %s95, %s96
      %p108 = scmp.eq.s32.totalorder %s23, 1
      %p109 = por %p107, %p108
      %p111 = scmp.ne.s32.totalorder %s96, %s110
      %p112 = scmp.eq.s32.totalorder %s23, 0
      %p113 = por %p111, %p112
      %s114 = ssub.s32 %s17, %s24
      %p115 = scmp.eq.s32.totalorder %s114, 0
      %s117 = sadd.s32 %s116, 1
      %s118 = scalar_select %p115, %s116, %s117
      %p121 = pneg %p115
      %p122 = scmp.eq.s32.totalorder %s17, 1
      %p123 = por %p121, %p122
      %p124 = scmp.ne.s32.totalorder %s116, %s119
      %p125 = scmp.eq.s32.totalorder %s17, 0
      %p126 = por %p124, %p125
      %p127 = scmp.ne.s32.totalorder %s116, %s119
      %p128 = scmp.eq.s32.totalorder %s22, 1
      %p129 = por %p127, %p128
      %p130 = scmp.ne.s32.totalorder %s119, %s120
      %p131 = scmp.eq.s32.totalorder %s22, 0
      %p132 = por %p130, %p131
      %p133 = scmp.ne.s32.totalorder %s119, %s120
      %p134 = scmp.eq.s32.totalorder %s23, 1
      %p135 = por %p133, %p134
      %p137 = scmp.ne.s32.totalorder %s120, %s136
      %p138 = scmp.eq.s32.totalorder %s23, 0
      %p139 = por %p137, %p138
      %p140 = scmp.le.s32.totalorder 1, %s17
      %p141 = scmp.lt.s32.totalorder %s17, 3
      %p142 = pnand %p140, %p141
      %p143 = pneg %p142
      // Predicated region
      $region9: #{tpu_custom_call.1} parent=5 // pred_check
        _
      $region10: #{tpu_custom_call.1} parent=5 // pred_check_branch
        %145 = sbr.rel (%p142) target = $region12
      $region11: #{tpu_custom_call.1} parent=5 // pred_region
        %s146 = ssub.s32 %s17, 1
        // Predicated region
        $region13: #{tpu_custom_call.1} parent=11 // pred_check
          %p147 = pneg %p64
        $region14: #{tpu_custom_call.1} parent=11 // pred_check_branch
          %149 = sbr.rel (%p147) target = $region16
        $region15: #{tpu_custom_call.1} parent=11 // pred_region
          %151 = vsyncadd [#allocation6], 0
          %s152 = sshll.u32 %s1, 4
          %s153 = int_to_ptr.hbm [resolvable:$true] %s152
          %s154 = sshll.u32 [#allocation5], 4
          %s155 = int_to_ptr.vmem [resolvable:$true] %s154
          %160 = dma.hbm_to_vmem [thread:$0]  %s153, 2048, %s155, [#allocation6], 128, 128, 8
        $region16: #{tpu_custom_call.1} parent=11 // pred_fallthru
          _
        // Predicated region
        $region17: #{tpu_custom_call.1} parent=11 // pred_check
          %p161 = pneg %p85
        $region18: #{tpu_custom_call.1} parent=11 // pred_check_branch
          %163 = sbr.rel (%p161) target = $region20
        $region19: #{tpu_custom_call.1} parent=11 // pred_region
          _
        $region20: #{tpu_custom_call.1} parent=11 // pred_fallthru
          _
        // Predicated region
        $region21: #{tpu_custom_call.1} parent=11 // pred_check
          %p164 = pneg %p106
        $region22: #{tpu_custom_call.1} parent=11 // pred_check_branch
          %166 = sbr.rel (%p164) target = $region24
        $region23: #{tpu_custom_call.1} parent=11 // pred_region
          %168 = vsyncadd [#allocation6], 0
          %s169 = sshll.u32 %s3, 4
          %s170 = int_to_ptr.hbm [resolvable:$true] %s169
          %s171 = sshll.u32 [#allocation7], 4
          %s172 = int_to_ptr.vmem [resolvable:$true] %s171
          %177 = dma.hbm_to_vmem [thread:$0]  %s170, 512, %s172, [#allocation6], 128, 128, 8
        $region24: #{tpu_custom_call.1} parent=11 // pred_fallthru
          _
      $region12: #{tpu_custom_call.1} parent=5 // pred_fallthru
        _
      %p178 = scmp.lt.s32.totalorder %s17, 2
      // Predicated region
      $region25: #{tpu_custom_call.1} parent=5 // pred_check
        %p179 = pneg %p178
      $region26: #{tpu_custom_call.1} parent=5 // pred_check_branch
        %181 = sbr.rel (%p179) target = $region28
      $region27: #{tpu_custom_call.1} parent=5 // pred_region
        // Predicated region
        $region29: #{tpu_custom_call.1} parent=27 // pred_check
          %p182 = pneg %p37
        $region30: #{tpu_custom_call.1} parent=27 // pred_check_branch
          %184 = sbr.rel (%p182) target = $region32
        $region31: #{tpu_custom_call.1} parent=27 // pred_region
          %s185 = sand.u32 %s27, 1
          %s186 = scalar_lea.sflag [#allocation3], %s185
          %s187 = sand.u32 %s27, 1
          %s188 = smul.addr %s187, 32
          %s189 = scalar_lea.vmem [#allocation2], %s188
          %191 = vsyncadd %s186, 0
          %s192 = smul.addr %s17, 8
          %s193 = scalar_lea.hbm %s0, %s192
          %s194 = sshll.u32 %s193, 4
          %s195 = int_to_ptr.hbm [resolvable:$true] %s194
          %s196 = sshll.u32 %s189, 4
          %s197 = int_to_ptr.vmem [resolvable:$true] %s196
          %202 = dma.hbm_to_vmem [thread:$0]  %s195, 512, %s197, %s186, 256, 128, 8
        $region32: #{tpu_custom_call.1} parent=27 // pred_fallthru
          _
      $region28: #{tpu_custom_call.1} parent=5 // pred_fallthru
        _
      %p203 = scmp.le.s32.totalorder 1, %s17
      %p204 = scmp.lt.s32.totalorder %s17, 3
      %p205 = pnand %p203, %p204
      %p206 = pneg %p205
      // Predicated region
      $region33: #{tpu_custom_call.1} parent=5 // pred_check
        _
      $region34: #{tpu_custom_call.1} parent=5 // pred_check_branch
        %208 = sbr.rel (%p205) target = $region36
      $region35: #{tpu_custom_call.1} parent=5 // pred_region
        %s209 = ssub.s32 %s17, 1
        %s210 = sand.u32 %s30, 1
        %s211 = scalar_lea.sflag [#allocation3], %s210
        %s212 = sand.u32 %s30, 1
        %s213 = smul.addr %s212, 32
        %s214 = scalar_lea.vmem [#allocation2], %s213
        // Predicated region
        $region37: #{tpu_custom_call.1} parent=35 // pred_check
          %p215 = pneg %p43
        $region38: #{tpu_custom_call.1} parent=35 // pred_check_branch
          %217 = sbr.rel (%p215) target = $region40
        $region39: #{tpu_custom_call.1} parent=35 // pred_region
          %219 = dma.done %s211, 512
        $region40: #{tpu_custom_call.1} parent=35 // pred_fallthru
          _
        // Predicated region
        $region41: #{tpu_custom_call.1} parent=35 // pred_check
          %p220 = pneg %p64
        $region42: #{tpu_custom_call.1} parent=35 // pred_check_branch
          %222 = sbr.rel (%p220) target = $region44
        $region43: #{tpu_custom_call.1} parent=35 // pred_region
          %224 = dma.done [#allocation6], 2048
        $region44: #{tpu_custom_call.1} parent=35 // pred_fallthru
          _
        // Predicated region
        $region45: #{tpu_custom_call.1} parent=35 // pred_check
          %p225 = pneg %p106
        $region46: #{tpu_custom_call.1} parent=35 // pred_check_branch
          %227 = sbr.rel (%p225) target = $region48
        $region47: #{tpu_custom_call.1} parent=35 // pred_region
          %229 = dma.done [#allocation6], 512
        $region48: #{tpu_custom_call.1} parent=35 // pred_fallthru
          _
        %s230 = sand.u32 %s30, 1
        %s231 = scalar_lea.sflag [#allocation3], %s230
        %s232 = sand.u32 %s30, 1
        %s233 = smul.addr %s232, 32
        %s234 = scalar_lea.vmem [#allocation2], %s233
        %p235 = pneg %p43
        %p236 = pneg %p40
        %p237 = pneg %p64
        %p238 = pneg %p61
        %p239 = pneg %p85
        %p240 = pneg %p82
        %p241 = pneg %p106
        %p242 = pneg %p103
        %p243 = pneg %p132
        %p244 = pneg %p129
        %s245 = sand.u32 %s119, 1
        %s246 = scalar_lea.sflag [#allocation4], %s245
        %s247 = sand.u32 %s119, 1
        %s248 = smul.addr %s247, 32
        %s249 = scalar_lea.vmem [#allocation8], %s248
        %v250 = vld [vmem:[%s214] sm:$0xff]
        %v251 = vld [vmem:[%s214 + $0x8] sm:$0xff]
        %v252 = vld [vmem:[%s214 + $0x10] sm:$0xff]
        %v253 = vld [vmem:[%s214 + $0x18] sm:$0xff]
        %v254 = vld [vmem:[#allocation5] sm:$0xff]
        %v255 = vld [vmem:[#allocation5 + $0x8] sm:$0xff]
        %v256 = vld [vmem:[#allocation5 + $0x10] sm:$0xff]
        %v257 = vld [vmem:[#allocation5 + $0x18] sm:$0xff]
        %v258 = vld [vmem:[#allocation5 + $0x20] sm:$0xff]
        %v259 = vld [vmem:[#allocation5 + $0x28] sm:$0xff]
        %v260 = vld [vmem:[#allocation5 + $0x30] sm:$0xff]
        %v261 = vld [vmem:[#allocation5 + $0x38] sm:$0xff]
        %v262 = vld [vmem:[#allocation5 + $0x40] sm:$0xff]
        %v263 = vld [vmem:[#allocation5 + $0x48] sm:$0xff]
        %v264 = vld [vmem:[#allocation5 + $0x50] sm:$0xff]
        %v265 = vld [vmem:[#allocation5 + $0x58] sm:$0xff]
        %v266 = vld [vmem:[#allocation5 + $0x60] sm:$0xff]
        %v267 = vld [vmem:[#allocation5 + $0x68] sm:$0xff]
        %v268 = vld [vmem:[#allocation5 + $0x70] sm:$0xff]
        %v269 = vld [vmem:[#allocation5 + $0x78] sm:$0xff]
        %v270 = vld [vmem:[%s2] sm:$0x1]
        %v272 = vperm.slane %v270, 0
        %274 = vmatpush.msra.mxu0 %v269
        %275 = vmatpush.msra.mxu0 %v268
        %276 = vmatpush.msra.mxu0 %v267
        %277 = vmatpush.msra.mxu0 %v266
        %278 = vmatpush.msra.mxu0 %v265
        %279 = vmatpush.msra.mxu0 %v264
        %280 = vmatpush.msra.mxu0 %v263
        %281 = vmatpush.msra.mxu0 %v262
        %282 = vmatpush.msra.mxu0 %v261
        %283 = vmatpush.msra.mxu0 %v260
        %284 = vmatpush.msra.mxu0 %v259
        %285 = vmatpush.msra.mxu0 %v258
        %286 = vmatpush.msra.mxu0 %v257
        %287 = vmatpush.msra.mxu0 %v256
        %288 = vmatpush.msra.mxu0 %v255
        %289 = vmatpush.msra.mxu0 %v254
        %290 = vmatmul.f32.gmra.mxu0 %v250
        %v291 = vpop.f32.mrf.mxu0
        %v292 = vadd.f32 %v272, %v291
        %293 = vmatmul.f32.gmra.mxu0 %v251
        %v294 = vpop.f32.mrf.mxu0
        %v295 = vadd.f32 %v272, %v294
        %296 = vmatmul.f32.gmra.mxu0 %v252
        %v297 = vpop.f32.mrf.mxu0
        %v298 = vadd.f32 %v272, %v297
        %299 = vmatmul.f32.gmra.mxu0 %v253
        %v300 = vpop.f32.mrf.mxu0
        %v301 = vadd.f32 %v272, %v300
        %302 = vdwg.mxu0
        %v303 = vmax.f32 %v292, 0.0
        %v304 = vmax.f32 %v295, 0.0
        %v305 = vmax.f32 %v298, 0.0
        %v306 = vmax.f32 %v301, 0.0
        %v307 = vld [vmem:[#allocation7] sm:$0xff]
        %v308 = vld [vmem:[#allocation7 + $0x8] sm:$0xff]
        %v309 = vld [vmem:[#allocation7 + $0x10] sm:$0xff]
        %v310 = vld [vmem:[#allocation7 + $0x18] sm:$0xff]
        %vm311 = vcmask 261120
        %v313 = vsel %vm311, %v307, 0
        %v316 = vsel %vm311, %v308, 0
        %v319 = vsel %vm311, %v309, 0
        %v322 = vsel %vm311, %v310, 0
        %324 = vmatpush.msra.mxu0 0.0
        %325 = vmatpush.msra.mxu0 0.0
        %326 = vmatpush.msra.mxu0 0.0
        %327 = vmatpush.msra.mxu0 0.0
        %328 = vmatpush.msra.mxu0 0.0
        %329 = vmatpush.msra.mxu0 0.0
        %330 = vmatpush.msra.mxu0 0.0
        %331 = vmatpush.msra.mxu0 0.0
        %332 = vmatpush.msra.mxu0 0.0
        %333 = vmatpush.msra.mxu0 0.0
        %334 = vmatpush.msra.mxu0 0.0
        %335 = vmatpush.msra.mxu0 0.0
        %336 = vmatpush.msra.mxu0 %v306
        %337 = vmatpush.msra.mxu0 %v305
        %338 = vmatpush.msra.mxu0 %v304
        %339 = vmatpush.msra.mxu0 %v303
        %340 = vmatmul.f32.gmra.mxu0 %v313
        %v341 = vpop.f32.mrf.mxu0
        %v342 = vadd.f32 0.0, %v341
        %343 = vmatmul.f32.gmra.mxu0 %v316
        %v344 = vpop.f32.mrf.mxu0
        %v345 = vadd.f32 0.0, %v344
        %346 = vmatmul.f32.gmra.mxu0 %v319
        %v347 = vpop.f32.mrf.mxu0
        %v348 = vadd.f32 0.0, %v347
        %349 = vmatmul.f32.gmra.mxu0 %v322
        %v350 = vpop.f32.mrf.mxu0
        %v351 = vadd.f32 0.0, %v350
        %352 = vdwg.mxu0
        %353 = vst [vmem:[%s249] sm:$0xff] %v342
        %354 = vst [vmem:[%s249 + $0x8] sm:$0xff] %v345
        %355 = vst [vmem:[%s249 + $0x10] sm:$0xff] %v348
        %356 = vst [vmem:[%s249 + $0x18] sm:$0xff] %v351
        %s357 = sand.u32 %s119, 1
        %s358 = scalar_lea.sflag [#allocation4], %s357
        %s359 = sand.u32 %s119, 1
        %s360 = smul.addr %s359, 32
        %s361 = scalar_lea.vmem [#allocation8], %s360
        // Predicated region
        $region49: #{tpu_custom_call.1} parent=35 // pred_check
          %p362 = pneg %p129
        $region50: #{tpu_custom_call.1} parent=35 // pred_check_branch
          %364 = sbr.rel (%p362) target = $region52
        $region51: #{tpu_custom_call.1} parent=35 // pred_region
          %366 = vsyncadd %s358, 0
          %s367 = smul.addr %s22, 8
          %s368 = scalar_lea.hbm %s4, %s367
          %s369 = sshll.u32 %s361, 4
          %s370 = int_to_ptr.vmem [resolvable:$true] %s369
          %s371 = sshll.u32 %s368, 4
          %s372 = int_to_ptr.hbm [resolvable:$true] %s371
          %377 = dma.vmem_to_hbm [thread:$0]  %s370, 512, %s372, %s358, 128, 256, 8
        $region52: #{tpu_custom_call.1} parent=35 // pred_fallthru
          _
      $region36: #{tpu_custom_call.1} parent=5 // pred_fallthru
        _
      %p378 = scmp.le.s32.totalorder 2, %s17
      // Predicated region
      $region53: #{tpu_custom_call.1} parent=5 // pred_check
        %p379 = pneg %p378
      $region54: #{tpu_custom_call.1} parent=5 // pred_check_branch
        %381 = sbr.rel (%p379) target = $region56
      $region55: #{tpu_custom_call.1} parent=5 // pred_region
        %s382 = ssub.s32 %s17, 2
        // Predicated region
        $region57: #{tpu_custom_call.1} parent=55 // pred_check
          %p383 = pneg %p135
        $region58: #{tpu_custom_call.1} parent=55 // pred_check_branch
          %385 = sbr.rel (%p383) target = $region60
        $region59: #{tpu_custom_call.1} parent=55 // pred_region
          %s386 = sand.u32 %s120, 1
          %s387 = scalar_lea.sflag [#allocation4], %s386
          %s388 = sand.u32 %s120, 1
          %s389 = smul.addr %s388, 32
          %s390 = scalar_lea.vmem [#allocation8], %s389
          %392 = dma.done %s387, 512
        $region60: #{tpu_custom_call.1} parent=55 // pred_fallthru
          _
      $region56: #{tpu_custom_call.1} parent=5 // pred_fallthru
        _
    $region6: #{tpu_custom_call.1} parent=1 // loop_footer
      %s21 = sadd.s32 1, %s17
    $region7: #{tpu_custom_call.1} parent=1 // loop_footer_branch
      %16 = sbr.rel target = $region3
    $region8: #{tpu_custom_call.1} parent=1 // loop_exit
      _
    %393 = vsyncpa [#allocation3], 1
    %s394 = scalar_lea.sflag [#allocation3], 1
    %395 = vsyncpa %s394, 1
    %396 = vsyncpa [#allocation6], 1
    %397 = vsyncpa [#allocation4], 1
    %s398 = scalar_lea.sflag [#allocation4], 1
    %399 = vsyncpa %s398, 1

</llo_original>
